<compile_context>
chip_gen: v7x
topology: tpu7x:2x2x1
jax: 0.10.0
libtpu: 0.0.40
codegen_flags: <defaults>
</compile_context>

<pallas_src>
import functools

import jax
import jax.numpy as jnp
from jax.experimental import pallas as pl
from jax.experimental.pallas import tpu as pltpu


def _round_up(x, m):
    return ((x + m - 1) // m) * m


def _coupling_kernel(state_ref, acopy_ref, atrans_ref, logpi_ref,
                     w1s_ref, w1c_ref, b1_ref, w2_ref, b2_ref,
                     action_out_ref, logpi_out_ref,
                     *, out_dim, parity):
    """One batch tile. Weights stay resident in VMEM across grid steps."""
    state = state_ref[...]          # (TB, 2A)
    acopy = acopy_ref[...]          # (TB, copy)
    atrans = atrans_ref[...]        # (TB, out_dim)

    # Fused first layer of both branches, concat replaced by split-weight sum:
    #   h = relu([state | acopy] @ [w_tp | w_sp] + [b_tp | b_sp])   -> (TB, 2H)
    h = jnp.dot(state, w1s_ref[...], preferred_element_type=jnp.float32)
    h = h + jnp.dot(acopy, w1c_ref[...], preferred_element_type=jnp.float32)
    h = jnp.maximum(h + b1_ref[...], 0.0)

    # Fused second layer (block-diagonal weight): ts = [t | s]  -> (TB, 2*out)
    ts = jnp.dot(h, w2_ref[...], preferred_element_type=jnp.float32) + b2_ref[...]
    t = ts[:, :out_dim]
    s = ts[:, out_dim:]

    out_transform = t + atrans * jnp.exp(s)

    # Single full-width, lane-dense store of the output tile.
    if parity == "odd":
        action_out_ref[...] = jnp.concatenate([acopy, out_transform], axis=1)
    else:
        action_out_ref[...] = jnp.concatenate([out_transform, acopy], axis=1)

    logpi_out_ref[...] = logpi_ref[...] - jnp.sum(s, axis=1, keepdims=True)


def coupling_layer_forward(action, state_embedding, log_pi, params,
                           *, action_size, parity="odd", batch_tile=512):
    """Pallas-backed forward pass of CouplingLayer.

    action:          (B, action_size)      float32
    state_embedding: (B, 2 * action_size)  float32
    log_pi:          (B,)                  float32
    params: dict with keys w_sp, b_sp, w_s, b_s, w_tp, b_tp, w_t, b_t
            (weights stored (in_features, out_features); y = x @ W + b)
    """
    if parity == "odd":
        copy_size = action_size // 2
    else:
        copy_size = action_size - action_size // 2
    out_dim = action_size - copy_size
    hid = params["w_tp"].shape[1]
    B = action.shape[0]

    action = action.astype(jnp.float32)
    state = state_embedding.astype(jnp.float32)
    log_pi_2d = log_pi.reshape(B, 1).astype(jnp.float32)

    # Split action in the wrapper (cheap XLA slice) so the kernel never slices
    # at non-lane-aligned feature offsets.
    if parity == "odd":
        acopy = action[:, :copy_size]
        atrans = action[:, copy_size:]
    else:
        acopy = action[:, action_size - copy_size:]
        atrans = action[:, :action_size - copy_size]

    # --- Fused / pre-split weights (host-side, one-time prep) ---------------
    # First layer: [w_tp | w_sp] split row-wise into state part and copy part.
    w1_full = jnp.concatenate([params["w_tp"], params["w_sp"]], axis=1)  # (in, 2H)
    w1s = w1_full[:2 * action_size]                                      # (2A, 2H)
    w1c = w1_full[2 * action_size:]                                      # (copy, 2H)
    b1 = jnp.concatenate([params["b_tp"], params["b_sp"]], axis=1)       # (1, 2H)
    # Second layer: block-diagonal so one matmul yields [t | s].
    zeros = jnp.zeros((hid, out_dim), jnp.float32)
    w2 = jnp.concatenate(
        [jnp.concatenate([params["w_t"], zeros], axis=1),
         jnp.concatenate([zeros, params["w_s"]], axis=1)], axis=0)       # (2H, 2*out)
    b2 = jnp.concatenate([params["b_t"], params["b_s"]], axis=1)         # (1, 2*out)

    # --- Batch tiling --------------------------------------------------------
    if B <= batch_tile:
        TB = _round_up(B, 8)
    else:
        TB = _round_up(batch_tile, 8)
    Bp = _round_up(B, TB)
    if Bp != B:
        pad = Bp - B
        acopy = jnp.pad(acopy, ((0, pad), (0, 0)))
        atrans = jnp.pad(atrans, ((0, pad), (0, 0)))
        state = jnp.pad(state, ((0, pad), (0, 0)))
        log_pi_2d = jnp.pad(log_pi_2d, ((0, pad), (0, 0)))
    grid = (Bp // TB,)

    def batch_spec(f):
        return pl.BlockSpec((TB, f), lambda i: (i, 0))

    def full_spec(arr):
        return pl.BlockSpec(arr.shape, lambda i: (0, 0))

    kernel = functools.partial(_coupling_kernel, out_dim=out_dim, parity=parity)

    action_out, logpi_out = pl.pallas_call(
        kernel,
        grid=grid,
        out_shape=(jax.ShapeDtypeStruct((Bp, action_size), jnp.float32),
                   jax.ShapeDtypeStruct((Bp, 1), jnp.float32)),
        in_specs=[batch_spec(2 * action_size),   # state
                  batch_spec(copy_size),         # action_copy
                  batch_spec(out_dim),           # action_transform
                  batch_spec(1),                 # log_pi
                  full_spec(w1s), full_spec(w1c), full_spec(b1),
                  full_spec(w2), full_spec(b2)],
        out_specs=(batch_spec(action_size), batch_spec(1)),
        compiler_params=pltpu.CompilerParams(
            dimension_semantics=("parallel",),
            vmem_limit_bytes=32 * 1024 * 1024),
    )(state, acopy, atrans, log_pi_2d, w1s, w1c, b1, w2, b2)

    return action_out[:B], logpi_out[:B, 0]


def init_params(key, action_size, parity="odd"):
    """Deterministic synthetic init matching the PyTorch module's shapes."""
    if parity == "odd":
        copy_size = action_size // 2
    else:
        copy_size = action_size - action_size // 2
    in_dim = action_size * 2 + copy_size
    hid = action_size
    out_dim = action_size - copy_size

    ks = jax.random.split(key, 8)
    scale_in = 1.0 / jnp.sqrt(jnp.float32(in_dim))
    scale_h = 1.0 / jnp.sqrt(jnp.float32(hid))
    params = {
        # scale branch (prenet: in_dim -> hid with ReLU; net: hid -> out_dim)
        "w_sp": jax.random.normal(ks[0], (in_dim, hid), jnp.float32) * scale_in,
        "b_sp": jax.random.normal(ks[1], (1, hid), jnp.float32) * 0.01,
        "w_s": jax.random.normal(ks[2], (hid, out_dim), jnp.float32) * scale_h * 0.1,
        "b_s": jnp.zeros((1, out_dim), jnp.float32),
        # translation branch
        "w_tp": jax.random.normal(ks[3], (in_dim, hid), jnp.float32) * scale_in,
        "b_tp": jax.random.normal(ks[4], (1, hid), jnp.float32) * 0.01,
        "w_t": jax.random.normal(ks[5], (hid, out_dim), jnp.float32) * scale_h * 0.1,
        "b_t": jnp.zeros((1, out_dim), jnp.float32),
    }
    return params


def _reference_forward(action, state_embedding, log_pi, params,
                       *, action_size, parity="odd"):
    """Pure-JAX reference mirroring the PyTorch forward exactly."""
    if parity == "odd":
        copy_size = action_size // 2
        action_copy = action[:, :copy_size]
        action_transform = action[:, copy_size:]
    else:
        copy_size = action_size - action_size // 2
        action_copy = action[:, -copy_size:]
        action_transform = action[:, :-copy_size]
    x = jnp.concatenate([state_embedding, action_copy], axis=1)
    t = jnp.maximum(x @ params["w_tp"] + params["b_tp"], 0.0) @ params["w_t"] + params["b_t"]
    s = jnp.maximum(x @ params["w_sp"] + params["b_sp"], 0.0) @ params["w_s"] + params["b_s"]
    out_transform = t + action_transform * jnp.exp(s)
    if parity == "odd":
        action_out = jnp.concatenate([action_copy, out_transform], axis=1)
    else:
        action_out = jnp.concatenate([out_transform, action_copy], axis=1)
    return action_out, log_pi - jnp.sum(s, axis=1)


if __name__ == "__main__":
    B = 8
    ACTION_SIZE = 8
    PARITY = "odd"

    key = jax.random.PRNGKey(0)
    k_a, k_s, k_l, k_p = jax.random.split(key, 4)
    action = jax.random.normal(k_a, (B, ACTION_SIZE), jnp.float32)
    state_embedding = jax.random.normal(k_s, (B, 2 * ACTION_SIZE), jnp.float32)
    log_pi = jax.random.normal(k_l, (B,), jnp.float32)
    params = init_params(k_p, ACTION_SIZE, parity=PARITY)

    action_out, log_pi_out = coupling_layer_forward(
        action, state_embedding, log_pi, params,
        action_size=ACTION_SIZE, parity=PARITY)
    jax.block_until_ready((action_out, log_pi_out))

    ref_action, ref_log_pi = _reference_forward(
        action, state_embedding, log_pi, params,
        action_size=ACTION_SIZE, parity=PARITY)

    assert jnp.allclose(action_out, ref_action, atol=1e-5, rtol=1e-5)
    assert jnp.allclose(log_pi_out, ref_log_pi, atol=1e-5, rtol=1e-5)

    print("KERNEL_OK")
</pallas_src>

<mosaic_0001>
module attributes {stable_mosaic.version = 11 : i64} {
  func.func @_coupling_kernel(%arg0: i32, %arg1: memref<8x16xf32, #tpu.memory_space<vmem>>, %arg2: memref<8x4xf32, #tpu.memory_space<vmem>>, %arg3: memref<8x4xf32, #tpu.memory_space<vmem>>, %arg4: memref<8x1xf32, #tpu.memory_space<vmem>>, %arg5: memref<16x16xf32, #tpu.memory_space<vmem>>, %arg6: memref<4x16xf32, #tpu.memory_space<vmem>>, %arg7: memref<1x16xf32, #tpu.memory_space<vmem>>, %arg8: memref<16x8xf32, #tpu.memory_space<vmem>>, %arg9: memref<1x8xf32, #tpu.memory_space<vmem>>, %arg10: memref<8x8xf32, #tpu.memory_space<vmem>>, %arg11: memref<8x1xf32, #tpu.memory_space<vmem>>) attributes {dimension_semantics = [#tpu.dimension_semantics<parallel>], iteration_bounds = array<i64: 1>, scalar_prefetch = 0 : i64, scratch_operands = 0 : i64, tpu.core_type = #tpu.core_type<tc>, window_params = [{transform_indices = @transform_0, window_bounds = array<i64: 8, 16>}, {transform_indices = @transform_1, window_bounds = array<i64: 8, 4>}, {transform_indices = @transform_2, window_bounds = array<i64: 8, 4>}, {transform_indices = @transform_3, window_bounds = array<i64: 8, 1>}, {pipeline_mode = #tpu.pipeline_mode<synchronous>, transform_indices = @transform_4, window_bounds = array<i64: 16, 16>}, {pipeline_mode = #tpu.pipeline_mode<synchronous>, transform_indices = @transform_5, window_bounds = array<i64: 4, 16>}, {pipeline_mode = #tpu.pipeline_mode<synchronous>, transform_indices = @transform_6, window_bounds = array<i64: 1, 16>}, {pipeline_mode = #tpu.pipeline_mode<synchronous>, transform_indices = @transform_7, window_bounds = array<i64: 16, 8>}, {pipeline_mode = #tpu.pipeline_mode<synchronous>, transform_indices = @transform_8, window_bounds = array<i64: 1, 8>}, {transform_indices = @transform_9, window_bounds = array<i64: 8, 8>}, {transform_indices = @transform_10, window_bounds = array<i64: 8, 1>}]} {
    %c0 = arith.constant 0 : index
    %c0_0 = arith.constant 0 : index
    %0 = vector.load %arg1[%c0, %c0_0] : memref<8x16xf32, #tpu.memory_space<vmem>>, vector<8x16xf32>
    %c0_1 = arith.constant 0 : index
    %c0_2 = arith.constant 0 : index
    %1 = vector.load %arg2[%c0_1, %c0_2] : memref<8x4xf32, #tpu.memory_space<vmem>>, vector<8x4xf32>
    %c0_3 = arith.constant 0 : index
    %c0_4 = arith.constant 0 : index
    %2 = vector.load %arg3[%c0_3, %c0_4] : memref<8x4xf32, #tpu.memory_space<vmem>>, vector<8x4xf32>
    %c0_5 = arith.constant 0 : index
    %c0_6 = arith.constant 0 : index
    %3 = vector.load %arg5[%c0_5, %c0_6] : memref<16x16xf32, #tpu.memory_space<vmem>>, vector<16x16xf32>
    %cst = arith.constant dense<0.000000e+00> : vector<8x16xf32>
    %4 = tpu.matmul %0, %3, %cst {dimension_numbers = #tpu.dot_dimension_numbers<[1], [0], [0], [1], [0, 0, 1, 1], [], []>} : vector<8x16xf32>, vector<16x16xf32>, vector<8x16xf32> -> vector<8x16xf32>
    %c0_7 = arith.constant 0 : index
    %c0_8 = arith.constant 0 : index
    %5 = vector.load %arg6[%c0_7, %c0_8] : memref<4x16xf32, #tpu.memory_space<vmem>>, vector<4x16xf32>
    %cst_9 = arith.constant dense<0.000000e+00> : vector<8x16xf32>
    %6 = tpu.matmul %1, %5, %cst_9 {dimension_numbers = #tpu.dot_dimension_numbers<[1], [0], [0], [1], [0, 0, 1, 1], [], []>} : vector<8x4xf32>, vector<4x16xf32>, vector<8x16xf32> -> vector<8x16xf32>
    %7 = arith.addf %4, %6 : vector<8x16xf32>
    %c0_10 = arith.constant 0 : index
    %c0_11 = arith.constant 0 : index
    %8 = vector.load %arg7[%c0_10, %c0_11] : memref<1x16xf32, #tpu.memory_space<vmem>>, vector<1x16xf32>
    %9 = vector.broadcast %8 : vector<1x16xf32> to vector<8x16xf32>
    %10 = arith.addf %7, %9 : vector<8x16xf32>
    %cst_12 = arith.constant 0.000000e+00 : f32
    %11 = vector.broadcast %cst_12 : f32 to vector<8x16xf32>
    %12 = arith.maximumf %10, %11 : vector<8x16xf32>
    %c0_13 = arith.constant 0 : index
    %c0_14 = arith.constant 0 : index
    %13 = vector.load %arg8[%c0_13, %c0_14] : memref<16x8xf32, #tpu.memory_space<vmem>>, vector<16x8xf32>
    %cst_15 = arith.constant dense<0.000000e+00> : vector<8x8xf32>
    %14 = tpu.matmul %12, %13, %cst_15 {dimension_numbers = #tpu.dot_dimension_numbers<[1], [0], [0], [1], [0, 0, 1, 1], [], []>} : vector<8x16xf32>, vector<16x8xf32>, vector<8x8xf32> -> vector<8x8xf32>
    %c0_16 = arith.constant 0 : index
    %c0_17 = arith.constant 0 : index
    %15 = vector.load %arg9[%c0_16, %c0_17] : memref<1x8xf32, #tpu.memory_space<vmem>>, vector<1x8xf32>
    %16 = vector.broadcast %15 : vector<1x8xf32> to vector<8x8xf32>
    %17 = arith.addf %14, %16 : vector<8x8xf32>
    %18 = vector.extract_strided_slice %17 {offsets = [0, 0], sizes = [8, 4], strides = [1, 1]} : vector<8x8xf32> to vector<8x4xf32>
    %19 = vector.extract_strided_slice %17 {offsets = [0, 4], sizes = [8, 4], strides = [1, 1]} : vector<8x8xf32> to vector<8x4xf32>
    %20 = math.exp %19 : vector<8x4xf32>
    %21 = arith.mulf %2, %20 : vector<8x4xf32>
    %22 = arith.addf %18, %21 : vector<8x4xf32>
    %23 = tpu.concatenate %1, %22 in 1 : vector<8x4xf32>, vector<8x4xf32> -> vector<8x8xf32>
    %c0_18 = arith.constant 0 : index
    %c0_19 = arith.constant 0 : index
    %24 = vector.load %arg10[%c0_18, %c0_19] : memref<8x8xf32, #tpu.memory_space<vmem>>, vector<8x8xf32>
    tpu.vector_store %arg10[%c0_18, %c0_19], %23 {strides = array<i32>} : memref<8x8xf32, #tpu.memory_space<vmem>>, vector<8x8xf32>,
    %c0_20 = arith.constant 0 : index
    %c0_21 = arith.constant 0 : index
    %25 = vector.load %arg4[%c0_20, %c0_21] : memref<8x1xf32, #tpu.memory_space<vmem>>, vector<8x1xf32>
    %cst_22 = arith.constant dense<0.000000e+00> : vector<8xf32>
    %26 = vector.multi_reduction <add>, %19, %cst_22 [1] : vector<8x4xf32> to vector<8xf32>
    %27 = vector.shape_cast %26 : vector<8xf32> to vector<8x1xf32>
    %28 = arith.subf %25, %27 : vector<8x1xf32>
    %c0_23 = arith.constant 0 : index
    %c0_24 = arith.constant 0 : index
    %29 = vector.load %arg11[%c0_23, %c0_24] : memref<8x1xf32, #tpu.memory_space<vmem>>, vector<8x1xf32>
    tpu.vector_store %arg11[%c0_23, %c0_24], %28 {strides = array<i32>} : memref<8x1xf32, #tpu.memory_space<vmem>>, vector<8x1xf32>,
    return
  }
  func.func @transform_0(%arg0: i32) -> (i32, i32) {
    %c0_i32 = arith.constant 0 : i32
    %c0_i32_0 = arith.constant 0 : i32
    return %arg0, %c0_i32 : i32, i32
  }
  func.func @transform_1(%arg0: i32) -> (i32, i32) {
    %c0_i32 = arith.constant 0 : i32
    %c0_i32_0 = arith.constant 0 : i32
    return %arg0, %c0_i32 : i32, i32
  }
  func.func @transform_2(%arg0: i32) -> (i32, i32) {
    %c0_i32 = arith.constant 0 : i32
    %c0_i32_0 = arith.constant 0 : i32
    return %arg0, %c0_i32 : i32, i32
  }
  func.func @transform_3(%arg0: i32) -> (i32, i32) {
    %c0_i32 = arith.constant 0 : i32
    %c0_i32_0 = arith.constant 0 : i32
    return %arg0, %c0_i32 : i32, i32
  }
  func.func @transform_4(%arg0: i32) -> (i32, i32) {
    %c0_i32 = arith.constant 0 : i32
    %c0_i32_0 = arith.constant 0 : i32
    %c0_i32_1 = arith.constant 0 : i32
    return %c0_i32, %c0_i32_0 : i32, i32
  }
  func.func @transform_5(%arg0: i32) -> (i32, i32) {
    %c0_i32 = arith.constant 0 : i32
    %c0_i32_0 = arith.constant 0 : i32
    %c0_i32_1 = arith.constant 0 : i32
    return %c0_i32, %c0_i32_0 : i32, i32
  }
  func.func @transform_6(%arg0: i32) -> (i32, i32) {
    %c0_i32 = arith.constant 0 : i32
    %c0_i32_0 = arith.constant 0 : i32
    %c0_i32_1 = arith.constant 0 : i32
    return %c0_i32, %c0_i32_0 : i32, i32
  }
  func.func @transform_7(%arg0: i32) -> (i32, i32) {
    %c0_i32 = arith.constant 0 : i32
    %c0_i32_0 = arith.constant 0 : i32
    %c0_i32_1 = arith.constant 0 : i32
    return %c0_i32, %c0_i32_0 : i32, i32
  }
  func.func @transform_8(%arg0: i32) -> (i32, i32) {
    %c0_i32 = arith.constant 0 : i32
    %c0_i32_0 = arith.constant 0 : i32
    %c0_i32_1 = arith.constant 0 : i32
    return %c0_i32, %c0_i32_0 : i32, i32
  }
  func.func @transform_9(%arg0: i32) -> (i32, i32) {
    %c0_i32 = arith.constant 0 : i32
    %c0_i32_0 = arith.constant 0 : i32
    return %arg0, %c0_i32 : i32, i32
  }
  func.func @transform_10(%arg0: i32) -> (i32, i32) {
    %c0_i32 = arith.constant 0 : i32
    %c0_i32_0 = arith.constant 0 : i32
    return %arg0, %c0_i32 : i32, i32
  }
}

</mosaic_0001>

<llo_original>
// kernel: tpu_custom_call.1
$region0: #{tpu_custom_call.1}
  #allocation0 [shape = 'u32[]', space=smem, size = 0x4, offset = 0x4, fixed_abs, tag = 'smem constant byte address 0x4 - core index']
  #allocation1 [shape = 'u32[144,128]{1,0:T(1,128)}', space=vmem, size = 0x12000, scoped, tag = 'internal scratch']
  %s0 = inlined_call_operand.vmem [shape: f32[8,16], index: 0, kind: input, shape index: {}]
  %s1 = inlined_call_operand.vmem [shape: f32[8,4], index: 1, kind: input, shape index: {}]
  %s2 = inlined_call_operand.vmem [shape: f32[8,4], index: 2, kind: input, shape index: {}]
  %s3 = inlined_call_operand.vmem [shape: f32[8,1], index: 3, kind: input, shape index: {}]
  %s4 = inlined_call_operand.vmem [shape: f32[16,16], index: 4, kind: input, shape index: {}]
  %s5 = inlined_call_operand.vmem [shape: f32[4,16], index: 5, kind: input, shape index: {}]
  %s6 = inlined_call_operand.vmem [shape: f32[1,16], index: 6, kind: input, shape index: {}]
  %s7 = inlined_call_operand.vmem [shape: f32[16,8], index: 7, kind: input, shape index: {}]
  %s8 = inlined_call_operand.vmem [shape: f32[1,8], index: 8, kind: input, shape index: {}]
  %s9 = inlined_call_operand.hbm [shape: f32[8,8], index: 9, kind: output, shape index: {0}]
  %s10 = inlined_call_operand.vmem [shape: f32[8,1], index: 10, kind: output, shape index: {1}]
  %11 = xla_tuple %s9, %s10
  %s12 = sld [smem:[#allocation0]]
  $region54: #{tpu_custom_call.1} parent=0
    _
  %s14 = ssub.s32 1, %s12
  %s15 = scalar_select 0, %s14, %s12
  $region1: #{tpu_custom_call.1} parent=0
    #allocation2 [shape = 'u8[4096]{0}', space=vmem, size = 0x1000, scoped, tag = 'output window, operand 0, single buffered']
    #allocation3 [shape = 's32[1]{0}', space=sflag, size = 0x4, scoped, tag = 'scoped memory for tpu_custom_call.1']
    %16 = vsyncpa [#allocation3], 0
    // Predicated region
    $region2: #{tpu_custom_call.1} parent=1 // pred_check
      _
    $region3: #{tpu_custom_call.1} parent=1 // pred_check_branch
      %18 = sbr.rel (0) target = $region5
    $region4: #{tpu_custom_call.1} parent=1 // pred_region
      _
    $region5: #{tpu_custom_call.1} parent=1 // pred_fallthru
      _
    // Predicated region
    $region6: #{tpu_custom_call.1} parent=1 // pred_check
      _
    $region7: #{tpu_custom_call.1} parent=1 // pred_check_branch
      %20 = sbr.rel (0) target = $region9
    $region8: #{tpu_custom_call.1} parent=1 // pred_region
      _
    $region9: #{tpu_custom_call.1} parent=1 // pred_fallthru
      _
    // Predicated region
    $region10: #{tpu_custom_call.1} parent=1 // pred_check
      _
    $region11: #{tpu_custom_call.1} parent=1 // pred_check_branch
      %22 = sbr.rel (0) target = $region13
    $region12: #{tpu_custom_call.1} parent=1 // pred_region
      _
    $region13: #{tpu_custom_call.1} parent=1 // pred_fallthru
      _
    // Predicated region
    $region14: #{tpu_custom_call.1} parent=1 // pred_check
      _
    $region15: #{tpu_custom_call.1} parent=1 // pred_check_branch
      %24 = sbr.rel (0) target = $region17
    $region16: #{tpu_custom_call.1} parent=1 // pred_region
      _
    $region17: #{tpu_custom_call.1} parent=1 // pred_fallthru
      _
    // Predicated region
    $region18: #{tpu_custom_call.1} parent=1 // pred_check
      _
    $region19: #{tpu_custom_call.1} parent=1 // pred_check_branch
      %26 = sbr.rel (0) target = $region21
    $region20: #{tpu_custom_call.1} parent=1 // pred_region
      _
    $region21: #{tpu_custom_call.1} parent=1 // pred_fallthru
      _
    // Predicated region
    $region22: #{tpu_custom_call.1} parent=1 // pred_check
      _
    $region23: #{tpu_custom_call.1} parent=1 // pred_check_branch
      %28 = sbr.rel (0) target = $region25
    $region24: #{tpu_custom_call.1} parent=1 // pred_region
      _
    $region25: #{tpu_custom_call.1} parent=1 // pred_fallthru
      _
    // Predicated region
    $region26: #{tpu_custom_call.1} parent=1 // pred_check
      _
    $region27: #{tpu_custom_call.1} parent=1 // pred_check_branch
      %30 = sbr.rel (0) target = $region29
    $region28: #{tpu_custom_call.1} parent=1 // pred_region
      _
    $region29: #{tpu_custom_call.1} parent=1 // pred_fallthru
      _
    // Predicated region
    $region30: #{tpu_custom_call.1} parent=1 // pred_check
      _
    $region31: #{tpu_custom_call.1} parent=1 // pred_check_branch
      %32 = sbr.rel (0) target = $region33
    $region32: #{tpu_custom_call.1} parent=1 // pred_region
      _
    $region33: #{tpu_custom_call.1} parent=1 // pred_fallthru
      _
    // Predicated region
    $region34: #{tpu_custom_call.1} parent=1 // pred_check
      _
    $region35: #{tpu_custom_call.1} parent=1 // pred_check_branch
      %34 = sbr.rel (0) target = $region37
    $region36: #{tpu_custom_call.1} parent=1 // pred_region
      _
    $region37: #{tpu_custom_call.1} parent=1 // pred_fallthru
      _
    %v35 = vld [vmem:[%s0] sm:$0xff]
    %v36 = vld [vmem:[%s1] sm:$0xff]
    %v37 = vld [vmem:[%s2] sm:$0xff]
    %v38 = vld [vmem:[%s4] sm:$0xff]
    %v39 = vld [vmem:[%s4 + $0x8] sm:$0xff]
    %v40 = vld [vmem:[%s5] sm:$0xf]
    %vm41 = vcmask 31744
    %v43 = vsel %vm41, %v36, 0
    %vm45 = vcmask 1043456
    %v47 = vsel %vm45, %v40, 0
    %49 = vmatprep.subr.mxu0 0.0
    %50 = vmatpush1.msra.mxu0 %v47
    %51 = vmatprep.subr.mxu0 0.0
    %52 = vmatpush1.msra.mxu0 0.0
    %53 = vmatprep.subr.mxu0 0.0
    %54 = vmatpush1.msra.mxu0 0.0
    %55 = vmatprep.subr.mxu0 0.0
    %56 = vmatpush1.msra.mxu0 0.0
    %57 = vmatprep.subr.mxu0 0.0
    %58 = vmatpush1.msra.mxu0 0.0
    %59 = vmatprep.subr.mxu0 0.0
    %60 = vmatpush1.msra.mxu0 0.0
    %61 = vmatprep.subr.mxu0 0.0
    %62 = vmatpush1.msra.mxu0 0.0
    %63 = vmatprep.subr.mxu0 0.0
    %64 = vmatpush1.msra.mxu0 0.0
    %65 = vmatprep.subr.mxu0 0.0
    %66 = vmatpush1.msra.mxu0 0.0
    %67 = vmatprep.subr.mxu0 0.0
    %68 = vmatpush1.msra.mxu0 0.0
    %69 = vmatprep.subr.mxu0 0.0
    %70 = vmatpush1.msra.mxu0 0.0
    %71 = vmatprep.subr.mxu0 0.0
    %72 = vmatpush1.msra.mxu0 0.0
    %73 = vmatprep.subr.mxu0 0.0
    %74 = vmatpush1.msra.mxu0 0.0
    %75 = vmatprep.subr.mxu0 0.0
    %76 = vmatpush1.msra.mxu0 0.0
    %77 = vmatprep.subr.mxu0 0.0
    %78 = vmatpush1.msra.mxu0 0.0
    %79 = vmatprep.subr.mxu0 0.0
    %80 = vmatpush1.msra.mxu0 0.0
    %81 = vmatprep.subr.mxu0 0.0
    %82 = vmatpush1.msra.mxu0 0.0
    %83 = vmatprep.subr.mxu0 0.0
    %84 = vmatpush1.msra.mxu0 0.0
    %85 = vmatprep.subr.mxu0 0.0
    %86 = vmatpush1.msra.mxu0 0.0
    %87 = vmatprep.subr.mxu0 0.0
    %88 = vmatpush1.msra.mxu0 0.0
    %89 = vmatprep.subr.mxu0 0.0
    %90 = vmatpush1.msra.mxu0 0.0
    %91 = vmatprep.subr.mxu0 0.0
    %92 = vmatpush1.msra.mxu0 0.0
    %93 = vmatprep.subr.mxu0 0.0
    %94 = vmatpush1.msra.mxu0 0.0
    %95 = vmatprep.subr.mxu0 0.0
    %96 = vmatpush1.msra.mxu0 0.0
    %97 = vmatprep.subr.mxu0 0.0
    %98 = vmatpush1.msra.mxu0 0.0
    %99 = vmatprep.subr.mxu0 0.0
    %100 = vmatpush1.msra.mxu0 0.0
    %101 = vmatprep.subr.mxu0 0.0
    %102 = vmatpush1.msra.mxu0 0.0
    %103 = vmatprep.subr.mxu0 0.0
    %104 = vmatpush1.msra.mxu0 0.0
    %105 = vmatprep.subr.mxu0 0.0
    %106 = vmatpush1.msra.mxu0 0.0
    %107 = vmatprep.subr.mxu0 0.0
    %108 = vmatpush1.msra.mxu0 0.0
    %109 = vmatprep.subr.mxu0 0.0
    %110 = vmatpush1.msra.mxu0 0.0
    %111 = vmatprep.subr.mxu0 0.0
    %112 = vmatpush1.msra.mxu0 0.0
    %113 = vmatprep.mubr.f32.mxu0 0.0
    %114 = vmatmul.mubr.f32.gmra.mrb[0].mxu0 %v43
    %v115 = vpop.f32.mrb[0].mxu0
    %v116 = vadd.f32 0.0, %v115
    %v117 = vpop.f32.mrb[0].mxu0
    %118 = vdwg.mxu0
    %vm119 = vcmask 130048
    %v121 = vsel %vm119, %v35, 0
    %123 = vmatprep.subr.mxu0 0.0
    %124 = vmatpush1.msra.mxu0 %v38
    %125 = vmatprep.subr.mxu0 0.0
    %126 = vmatpush1.msra.mxu0 %v39
    %127 = vmatprep.subr.mxu0 0.0
    %128 = vmatpush1.msra.mxu0 0.0
    %129 = vmatprep.subr.mxu0 0.0
    %130 = vmatpush1.msra.mxu0 0.0
    %131 = vmatprep.subr.mxu0 0.0
    %132 = vmatpush1.msra.mxu0 0.0
    %133 = vmatprep.subr.mxu0 0.0
    %134 = vmatpush1.msra.mxu0 0.0
    %135 = vmatprep.subr.mxu0 0.0
    %136 = vmatpush1.msra.mxu0 0.0
    %137 = vmatprep.subr.mxu0 0.0
    %138 = vmatpush1.msra.mxu0 0.0
    %139 = vmatprep.subr.mxu0 0.0
    %140 = vmatpush1.msra.mxu0 0.0
    %141 = vmatprep.subr.mxu0 0.0
    %142 = vmatpush1.msra.mxu0 0.0
    %143 = vmatprep.subr.mxu0 0.0
    %144 = vmatpush1.msra.mxu0 0.0
    %145 = vmatprep.subr.mxu0 0.0
    %146 = vmatpush1.msra.mxu0 0.0
    %147 = vmatprep.subr.mxu0 0.0
    %148 = vmatpush1.msra.mxu0 0.0
    %149 = vmatprep.subr.mxu0 0.0
    %150 = vmatpush1.msra.mxu0 0.0
    %151 = vmatprep.subr.mxu0 0.0
    %152 = vmatpush1.msra.mxu0 0.0
    %153 = vmatprep.subr.mxu0 0.0
    %154 = vmatpush1.msra.mxu0 0.0
    %155 = vmatprep.subr.mxu0 0.0
    %156 = vmatpush1.msra.mxu0 0.0
    %157 = vmatprep.subr.mxu0 0.0
    %158 = vmatpush1.msra.mxu0 0.0
    %159 = vmatprep.subr.mxu0 0.0
    %160 = vmatpush1.msra.mxu0 0.0
    %161 = vmatprep.subr.mxu0 0.0
    %162 = vmatpush1.msra.mxu0 0.0
    %163 = vmatprep.subr.mxu0 0.0
    %164 = vmatpush1.msra.mxu0 0.0
    %165 = vmatprep.subr.mxu0 0.0
    %166 = vmatpush1.msra.mxu0 0.0
    %167 = vmatprep.subr.mxu0 0.0
    %168 = vmatpush1.msra.mxu0 0.0
    %169 = vmatprep.subr.mxu0 0.0
    %170 = vmatpush1.msra.mxu0 0.0
    %171 = vmatprep.subr.mxu0 0.0
    %172 = vmatpush1.msra.mxu0 0.0
    %173 = vmatprep.subr.mxu0 0.0
    %174 = vmatpush1.msra.mxu0 0.0
    %175 = vmatprep.subr.mxu0 0.0
    %176 = vmatpush1.msra.mxu0 0.0
    %177 = vmatprep.subr.mxu0 0.0
    %178 = vmatpush1.msra.mxu0 0.0
    %179 = vmatprep.subr.mxu0 0.0
    %180 = vmatpush1.msra.mxu0 0.0
    %181 = vmatprep.subr.mxu0 0.0
    %182 = vmatpush1.msra.mxu0 0.0
    %183 = vmatprep.subr.mxu0 0.0
    %184 = vmatpush1.msra.mxu0 0.0
    %185 = vmatprep.subr.mxu0 0.0
    %186 = vmatpush1.msra.mxu0 0.0
    %187 = vmatprep.mubr.f32.mxu0 0.0
    %188 = vmatmul.mubr.f32.gmra.mrb[0].mxu0 %v121
    %v189 = vpop.f32.mrb[0].mxu0
    %v190 = vadd.f32 %v116, %v189
    %v191 = vpop.f32.mrb[0].mxu0
    %192 = vdwg.mxu0
    %v193 = vld [vmem:[%s6] sm:$0x1]
    %v195 = vlaneseq
    %v196 = vshrl.u32 %v195, 7
    %v197 = vsub.s32 0, %v196
    %v198 = vrot.slane %v193, %v197
    %v200 = vadd.f32 %v190, %v198
    %v201 = vmax.f32 %v200, 0.0
    %v202 = vld [vmem:[%s7] sm:$0xff]
    %v203 = vld [vmem:[%s7 + $0x8] sm:$0xff]
    %v204 = vld [vmem:[%s8] sm:$0x1]
    %v206 = vlaneseq
    %v207 = vshrl.u32 %v206, 7
    %v208 = vsub.s32 0, %v207
    %v209 = vrot.slane %v204, %v208
    %v212 = vsel %vm119, %v201, 0
    %214 = vmatprep.subr.mxu0 0.0
    %215 = vmatpush1.msra.mxu0 %v202
    %216 = vmatprep.subr.mxu0 0.0
    %217 = vmatpush1.msra.mxu0 %v203
    %218 = vmatprep.subr.mxu0 0.0
    %219 = vmatpush1.msra.mxu0 0.0
    %220 = vmatprep.subr.mxu0 0.0
    %221 = vmatpush1.msra.mxu0 0.0
    %222 = vmatprep.subr.mxu0 0.0
    %223 = vmatpush1.msra.mxu0 0.0
    %224 = vmatprep.subr.mxu0 0.0
    %225 = vmatpush1.msra.mxu0 0.0
    %226 = vmatprep.subr.mxu0 0.0
    %227 = vmatpush1.msra.mxu0 0.0
    %228 = vmatprep.subr.mxu0 0.0
    %229 = vmatpush1.msra.mxu0 0.0
    %230 = vmatprep.subr.mxu0 0.0
    %231 = vmatpush1.msra.mxu0 0.0
    %232 = vmatprep.subr.mxu0 0.0
    %233 = vmatpush1.msra.mxu0 0.0
    %234 = vmatprep.subr.mxu0 0.0
    %235 = vmatpush1.msra.mxu0 0.0
    %236 = vmatprep.subr.mxu0 0.0
    %237 = vmatpush1.msra.mxu0 0.0
    %238 = vmatprep.subr.mxu0 0.0
    %239 = vmatpush1.msra.mxu0 0.0
    %240 = vmatprep.subr.mxu0 0.0
    %241 = vmatpush1.msra.mxu0 0.0
    %242 = vmatprep.subr.mxu0 0.0
    %243 = vmatpush1.msra.mxu0 0.0
    %244 = vmatprep.subr.mxu0 0.0
    %245 = vmatpush1.msra.mxu0 0.0
    %246 = vmatprep.subr.mxu0 0.0
    %247 = vmatpush1.msra.mxu0 0.0
    %248 = vmatprep.subr.mxu0 0.0
    %249 = vmatpush1.msra.mxu0 0.0
    %250 = vmatprep.subr.mxu0 0.0
    %251 = vmatpush1.msra.mxu0 0.0
    %252 = vmatprep.subr.mxu0 0.0
    %253 = vmatpush1.msra.mxu0 0.0
    %254 = vmatprep.subr.mxu0 0.0
    %255 = vmatpush1.msra.mxu0 0.0
    %256 = vmatprep.subr.mxu0 0.0
    %257 = vmatpush1.msra.mxu0 0.0
    %258 = vmatprep.subr.mxu0 0.0
    %259 = vmatpush1.msra.mxu0 0.0
    %260 = vmatprep.subr.mxu0 0.0
    %261 = vmatpush1.msra.mxu0 0.0
    %262 = vmatprep.subr.mxu0 0.0
    %263 = vmatpush1.msra.mxu0 0.0
    %264 = vmatprep.subr.mxu0 0.0
    %265 = vmatpush1.msra.mxu0 0.0
    %266 = vmatprep.subr.mxu0 0.0
    %267 = vmatpush1.msra.mxu0 0.0
    %268 = vmatprep.subr.mxu0 0.0
    %269 = vmatpush1.msra.mxu0 0.0
    %270 = vmatprep.subr.mxu0 0.0
    %271 = vmatpush1.msra.mxu0 0.0
    %272 = vmatprep.subr.mxu0 0.0
    %273 = vmatpush1.msra.mxu0 0.0
    %274 = vmatprep.subr.mxu0 0.0
    %275 = vmatpush1.msra.mxu0 0.0
    %276 = vmatprep.subr.mxu0 0.0
    %277 = vmatpush1.msra.mxu0 0.0
    %278 = vmatprep.mubr.f32.mxu0 0.0
    %279 = vmatmul.mubr.f32.gmra.mrb[0].mxu0 %v212
    %v280 = vpop.f32.mrb[0].mxu0
    %v281 = vadd.f32 %v209, %v280
    %v282 = vpop.f32.mrb[0].mxu0
    %283 = vdwg.mxu0
    %v284 = vmul.f32 %v281, 1.442695
    %v285 = vpow.pop %v284
    %287 = vrot.lane.b32.xlu0 %v285, 124
    %v288 = vpop.permute.xlu0 %287
    %v290 = vmul.f32 %v37, %v288
    %v291 = vadd.f32 %v281, %v290
    %293 = vrot.lane.b32.xlu0 %v291, 4
    %v294 = vpop.permute.xlu0 %293
    %v296 = vsel %vm41, %v36, %v294
    %vm297 = vcmask 64512
    %298 = vst.msk [vmem:[#allocation2] sm:$0xff] %vm297, %v296
    %v299 = vld [vmem:[%s3] sm:$0xff]
    %301 = vrot.lane.b32.xlu0 %v281, 124
    %v302 = vpop.permute.xlu0 %301
    %v304 = vsel %vm41, %v302, 0.0
    %305 = vadd.xlane.f32.xlu0 %v304
    %v306 = vpop.xlane.xlu0 %305
    %v307 = vsub.f32 %v299, %v306
    %vm308 = vcmask 7168
    %309 = vst.msk [vmem:[%s10] sm:$0xff] %vm308, %v307
    // Predicated region
    $region38: #{tpu_custom_call.1} parent=1 // pred_check
      _
    $region39: #{tpu_custom_call.1} parent=1 // pred_check_branch
      %311 = sbr.rel (0) target = $region41
    $region40: #{tpu_custom_call.1} parent=1 // pred_region
      %s313 = ssub.s32 128, 128
      %314 = vsyncadd [#allocation3], %s313
      %s316 = sshll.u32 [#allocation2], 4
      %s317 = int_to_ptr.vmem [resolvable:$true] %s316
      %319 = dma.vmem_to_hbm [thread:$0]  %s317, 128, %s9, [#allocation3]
    $region41: #{tpu_custom_call.1} parent=1 // pred_fallthru
      _
    // Predicated region
    $region42: #{tpu_custom_call.1} parent=1 // pred_check
      _
    $region43: #{tpu_custom_call.1} parent=1 // pred_check_branch
      %321 = sbr.rel (0) target = $region45
    $region44: #{tpu_custom_call.1} parent=1 // pred_region
      _
    $region45: #{tpu_custom_call.1} parent=1 // pred_fallthru
      _
    // Predicated region
    $region46: #{tpu_custom_call.1} parent=1 // pred_check
      _
    $region47: #{tpu_custom_call.1} parent=1 // pred_check_branch
      %323 = sbr.rel (0) target = $region49
    $region48: #{tpu_custom_call.1} parent=1 // pred_region
      %324 = dma.done [#allocation3], 128
    $region49: #{tpu_custom_call.1} parent=1 // pred_fallthru
      _
    // Predicated region
    $region50: #{tpu_custom_call.1} parent=1 // pred_check
      _
    $region51: #{tpu_custom_call.1} parent=1 // pred_check_branch
      %326 = sbr.rel (0) target = $region53
    $region52: #{tpu_custom_call.1} parent=1 // pred_region
      _
    $region53: #{tpu_custom_call.1} parent=1 // pred_fallthru
      _
    %327 = vsyncpa [#allocation3], 1

</llo_original>
